<compile_context>
chip_gen: v5e
topology: v5e:2x2
jax: 0.10.0
libtpu: 0.0.40
codegen_flags: <defaults>
</compile_context>

<pallas_src>
import jax
import jax.numpy as jnp
from jax.experimental import pallas as pl
from jax.experimental.pallas import tpu as pltpu

# ---- module hyper-parameters (small, consistent with the PyTorch module) ----
B, T = 2, 3                 # batch, sequence length of images
IMAGE_SIZE = 16
KSIZE = 10
STRIDE = 2
NF = 8                      # n_filters (default 96, shrunk for the example)
POOL = 2
OUT_DIM = 32

OH = (IMAGE_SIZE - KSIZE) // STRIDE + 1     # conv output height  = 4
OW = OH                                     # conv output width   = 4
PH = OH // POOL                             # pooled height       = 2
PW = OW // POOL                             # pooled width        = 2
P = OH * OW                                 # conv spatial positions  = 16
Q = PH * PW                                 # pooled spatial positions = 4
HW = IMAGE_SIZE * IMAGE_SIZE                # pixels per image = 256 (= 2 lane tiles)
DENSE_DIM = NF * Q                          # flatten dim = 32


def image_embed_kernel(img_ref, wfull_ref, bc_ref, wd_ref, bd_ref, out_ref):
    """Fused conv(one matmul) + bias + ReLU + 2x2 maxpool + dense(one matmul)."""
    # ---- conv: ONE MXU matmul directly from raw pixels -------------------------
    # (tile_n, HW) @ (HW, P*NF) -> (tile_n, P*NF); columns are p-major, f-minor and
    # fully lane-dense (P*NF = 128 here).
    conv = jnp.dot(img_ref[...], wfull_ref[...],
                   preferred_element_type=jnp.float32)
    conv = jnp.maximum(conv + bc_ref[...], 0.0)          # one broadcast add + ReLU

    # ---- 2x2 max-pool: max over 4 aligned NF-wide lane blocks per pooled pos ----
    pooled = []
    for qi in range(PH):
        for qj in range(PW):
            m = None
            for di in range(POOL):
                for dj in range(POOL):
                    p = (POOL * qi + di) * OW + (POOL * qj + dj)
                    blk = conv[:, p * NF:(p + 1) * NF]   # (tile_n, NF) lane slice
                    m = blk if m is None else jnp.maximum(m, blk)
            pooled.append(m)
    pooled_flat = jnp.concatenate(pooled, axis=-1)       # (tile_n, Q*NF), q-major

    # ---- dense: ONE MXU matmul + bias -------------------------------------------
    out_ref[...] = jnp.dot(pooled_flat, wd_ref[...],
                           preferred_element_type=jnp.float32) + bd_ref[...]


@jax.jit
def image_embedding_forward(x, conv_w, conv_b, dense_w, dense_b):
    """x: (B, T, 1, H, W) -> (B, T, OUT_DIM), matching the PyTorch module."""
    assert x.shape[2:] == (1, IMAGE_SIZE, IMAGE_SIZE), x.shape
    b, t = x.shape[0], x.shape[1]
    n = b * t
    n_pad = ((n + 7) // 8) * 8                          # sublane-aligned image count

    imgs = x.reshape(n, HW)                             # channel dim = 1 squeezed
    imgs = jnp.pad(imgs, ((0, n_pad - n), (0, 0)))      # pad rows with zeros

    # Unrolled conv weight: w_full[hw, p*NF + f] = conv_w[f, 0, r - oh*S, c - ow*S]
    # inside position p's window, 0 elsewhere.  (In a real module this is built once
    # at parameter-load time, not per forward.)
    w_t = jnp.transpose(conv_w.reshape(NF, KSIZE, KSIZE), (1, 2, 0))   # (K, K, F)
    cols = []
    for p in range(P):
        oh, ow = divmod(p, OW)
        blk = jnp.zeros((IMAGE_SIZE, IMAGE_SIZE, NF), jnp.float32)
        blk = blk.at[oh * STRIDE:oh * STRIDE + KSIZE,
                     ow * STRIDE:ow * STRIDE + KSIZE, :].set(w_t)
        cols.append(blk.reshape(HW, NF))
    w_full = jnp.concatenate(cols, axis=1)              # (HW, P*NF) = (256, 128)

    # Conv bias pre-tiled to the conv slab's column order (p-major, f-minor).
    bc_row = jnp.tile(conv_b.reshape(1, NF), (1, P))    # (1, P*NF)

    # dense_w: (O, DENSE_DIM) with PyTorch NCHW flatten order d = f*Q + q
    #   -> wd[q*NF + f, o] == dense_w[o, f*Q + q]
    wd = jnp.transpose(dense_w.reshape(OUT_DIM, NF, Q), (2, 1, 0)).reshape(Q * NF, OUT_DIM)
    bd = dense_b.reshape(1, OUT_DIM)

    tile_n = 8                                          # multiple of 8; raise at production sizes
    grid = (n_pad // tile_n,)

    out = pl.pallas_call(
        image_embed_kernel,
        out_shape=jax.ShapeDtypeStruct((n_pad, OUT_DIM), jnp.float32),
        grid=grid,
        in_specs=[
            pl.BlockSpec((tile_n, HW), lambda i: (i, 0)),          # pixel slab (pipelined)
            pl.BlockSpec((HW, P * NF), lambda i: (0, 0)),          # weights: constant index_map,
            pl.BlockSpec((1, P * NF), lambda i: (0, 0)),           #   stay resident in VMEM
            pl.BlockSpec((Q * NF, OUT_DIM), lambda i: (0, 0)),
            pl.BlockSpec((1, OUT_DIM), lambda i: (0, 0)),
        ],
        out_specs=pl.BlockSpec((tile_n, OUT_DIM), lambda i: (i, 0)),
        compiler_params=pltpu.CompilerParams(
            dimension_semantics=("parallel",)),                    # image axis: 2 TCs on v7x
    )(imgs, w_full, bc_row, wd, bd)

    return out[:n].reshape(b, t, OUT_DIM)


def reference_forward(x, conv_w, conv_b, dense_w, dense_b):
    """Pure-JAX reference matching PyTorch semantics (for verification)."""
    b, t = x.shape[0], x.shape[1]
    xi = x.reshape(b * t, 1, IMAGE_SIZE, IMAGE_SIZE)
    y = jax.lax.conv_general_dilated(
        xi, conv_w, (STRIDE, STRIDE), "VALID",
        dimension_numbers=("NCHW", "OIHW", "NCHW"),
        precision=jax.lax.Precision.HIGHEST)
    y = y + conv_b.reshape(1, NF, 1, 1)
    y = jnp.maximum(y, 0.0)                                 # (N, F, OH, OW)
    y = y.reshape(b * t, NF, PH, POOL, PW, POOL).max(axis=(3, 5))
    flat = y.reshape(b * t, DENSE_DIM)                      # NCHW flatten
    out = jnp.dot(flat, dense_w.T,
                  precision=jax.lax.Precision.HIGHEST) + dense_b
    return out.reshape(b, t, OUT_DIM)


if __name__ == "__main__":
    key = jax.random.PRNGKey(0)
    k1, k2, k3, k4, k5 = jax.random.split(key, 5)

    # deterministic synthetic parameters (shapes match nn.Conv2d / nn.Linear)
    conv_w = jax.random.normal(k1, (NF, 1, KSIZE, KSIZE), jnp.float32) * 0.05
    conv_b = jax.random.normal(k2, (NF,), jnp.float32) * 0.05
    dense_w = jax.random.normal(k3, (OUT_DIM, DENSE_DIM), jnp.float32) * 0.05
    dense_b = jax.random.normal(k4, (OUT_DIM,), jnp.float32) * 0.05

    x = jax.random.normal(k5, (B, T, 1, IMAGE_SIZE, IMAGE_SIZE), jnp.float32)

    out = image_embedding_forward(x, conv_w, conv_b, dense_w, dense_b)
    out = jax.block_until_ready(out)

    ref = reference_forward(x, conv_w, conv_b, dense_w, dense_b)
    assert out.shape == (B, T, OUT_DIM), out.shape
    assert jnp.allclose(out, ref, rtol=1e-3, atol=1e-3), \
        float(jnp.max(jnp.abs(out - ref)))

    print("KERNEL_OK")
</pallas_src>

<mosaic_0001>
module attributes {stable_mosaic.version = 11 : i64} {
  func.func @image_embed_kernel(%arg0: i32, %arg1: memref<8x256xf32, #tpu.memory_space<vmem>>, %arg2: memref<256x128xf32, #tpu.memory_space<vmem>>, %arg3: memref<1x128xf32, #tpu.memory_space<vmem>>, %arg4: memref<32x32xf32, #tpu.memory_space<vmem>>, %arg5: memref<1x32xf32, #tpu.memory_space<vmem>>, %arg6: memref<8x32xf32, #tpu.memory_space<vmem>>) attributes {dimension_semantics = [#tpu.dimension_semantics<parallel>], iteration_bounds = array<i64: 1>, scalar_prefetch = 0 : i64, scratch_operands = 0 : i64, tpu.core_type = #tpu.core_type<tc>, window_params = [{transform_indices = @transform_0, window_bounds = array<i64: 8, 256>}, {pipeline_mode = #tpu.pipeline_mode<synchronous>, transform_indices = @transform_1, window_bounds = array<i64: 256, 128>}, {pipeline_mode = #tpu.pipeline_mode<synchronous>, transform_indices = @transform_2, window_bounds = array<i64: 1, 128>}, {pipeline_mode = #tpu.pipeline_mode<synchronous>, transform_indices = @transform_3, window_bounds = array<i64: 32, 32>}, {pipeline_mode = #tpu.pipeline_mode<synchronous>, transform_indices = @transform_4, window_bounds = array<i64: 1, 32>}, {transform_indices = @transform_5, window_bounds = array<i64: 8, 32>}]} {
    %c0 = arith.constant 0 : index
    %c0_0 = arith.constant 0 : index
    %0 = vector.load %arg1[%c0, %c0_0] : memref<8x256xf32, #tpu.memory_space<vmem>>, vector<8x256xf32>
    %c0_1 = arith.constant 0 : index
    %c0_2 = arith.constant 0 : index
    %1 = vector.load %arg2[%c0_1, %c0_2] : memref<256x128xf32, #tpu.memory_space<vmem>>, vector<256x128xf32>
    %cst = arith.constant dense<0.000000e+00> : vector<8x128xf32>
    %2 = tpu.matmul %0, %1, %cst {dimension_numbers = #tpu.dot_dimension_numbers<[1], [0], [0], [1], [0, 0, 1, 1], [], []>} : vector<8x256xf32>, vector<256x128xf32>, vector<8x128xf32> -> vector<8x128xf32>
    %c0_3 = arith.constant 0 : index
    %c0_4 = arith.constant 0 : index
    %3 = vector.load %arg3[%c0_3, %c0_4] : memref<1x128xf32, #tpu.memory_space<vmem>>, vector<1x128xf32>
    %4 = vector.broadcast %3 : vector<1x128xf32> to vector<8x128xf32>
    %5 = arith.addf %2, %4 : vector<8x128xf32>
    %cst_5 = arith.constant 0.000000e+00 : f32
    %6 = vector.broadcast %cst_5 : f32 to vector<8x128xf32>
    %7 = arith.maximumf %5, %6 : vector<8x128xf32>
    %8 = vector.extract_strided_slice %7 {offsets = [0, 0], sizes = [8, 8], strides = [1, 1]} : vector<8x128xf32> to vector<8x8xf32>
    %9 = vector.extract_strided_slice %7 {offsets = [0, 8], sizes = [8, 8], strides = [1, 1]} : vector<8x128xf32> to vector<8x8xf32>
    %10 = arith.maximumf %8, %9 : vector<8x8xf32>
    %11 = vector.extract_strided_slice %7 {offsets = [0, 32], sizes = [8, 8], strides = [1, 1]} : vector<8x128xf32> to vector<8x8xf32>
    %12 = arith.maximumf %10, %11 : vector<8x8xf32>
    %13 = vector.extract_strided_slice %7 {offsets = [0, 40], sizes = [8, 8], strides = [1, 1]} : vector<8x128xf32> to vector<8x8xf32>
    %14 = arith.maximumf %12, %13 : vector<8x8xf32>
    %15 = vector.extract_strided_slice %7 {offsets = [0, 16], sizes = [8, 8], strides = [1, 1]} : vector<8x128xf32> to vector<8x8xf32>
    %16 = vector.extract_strided_slice %7 {offsets = [0, 24], sizes = [8, 8], strides = [1, 1]} : vector<8x128xf32> to vector<8x8xf32>
    %17 = arith.maximumf %15, %16 : vector<8x8xf32>
    %18 = vector.extract_strided_slice %7 {offsets = [0, 48], sizes = [8, 8], strides = [1, 1]} : vector<8x128xf32> to vector<8x8xf32>
    %19 = arith.maximumf %17, %18 : vector<8x8xf32>
    %20 = vector.extract_strided_slice %7 {offsets = [0, 56], sizes = [8, 8], strides = [1, 1]} : vector<8x128xf32> to vector<8x8xf32>
    %21 = arith.maximumf %19, %20 : vector<8x8xf32>
    %22 = vector.extract_strided_slice %7 {offsets = [0, 64], sizes = [8, 8], strides = [1, 1]} : vector<8x128xf32> to vector<8x8xf32>
    %23 = vector.extract_strided_slice %7 {offsets = [0, 72], sizes = [8, 8], strides = [1, 1]} : vector<8x128xf32> to vector<8x8xf32>
    %24 = arith.maximumf %22, %23 : vector<8x8xf32>
    %25 = vector.extract_strided_slice %7 {offsets = [0, 96], sizes = [8, 8], strides = [1, 1]} : vector<8x128xf32> to vector<8x8xf32>
    %26 = arith.maximumf %24, %25 : vector<8x8xf32>
    %27 = vector.extract_strided_slice %7 {offsets = [0, 104], sizes = [8, 8], strides = [1, 1]} : vector<8x128xf32> to vector<8x8xf32>
    %28 = arith.maximumf %26, %27 : vector<8x8xf32>
    %29 = vector.extract_strided_slice %7 {offsets = [0, 80], sizes = [8, 8], strides = [1, 1]} : vector<8x128xf32> to vector<8x8xf32>
    %30 = vector.extract_strided_slice %7 {offsets = [0, 88], sizes = [8, 8], strides = [1, 1]} : vector<8x128xf32> to vector<8x8xf32>
    %31 = arith.maximumf %29, %30 : vector<8x8xf32>
    %32 = vector.extract_strided_slice %7 {offsets = [0, 112], sizes = [8, 8], strides = [1, 1]} : vector<8x128xf32> to vector<8x8xf32>
    %33 = arith.maximumf %31, %32 : vector<8x8xf32>
    %34 = vector.extract_strided_slice %7 {offsets = [0, 120], sizes = [8, 8], strides = [1, 1]} : vector<8x128xf32> to vector<8x8xf32>
    %35 = arith.maximumf %33, %34 : vector<8x8xf32>
    %36 = tpu.concatenate %14, %21, %28, %35 in 1 : vector<8x8xf32>, vector<8x8xf32>, vector<8x8xf32>, vector<8x8xf32> -> vector<8x32xf32>
    %c0_6 = arith.constant 0 : index
    %c0_7 = arith.constant 0 : index
    %37 = vector.load %arg4[%c0_6, %c0_7] : memref<32x32xf32, #tpu.memory_space<vmem>>, vector<32x32xf32>
    %cst_8 = arith.constant dense<0.000000e+00> : vector<8x32xf32>
    %38 = tpu.matmul %36, %37, %cst_8 {dimension_numbers = #tpu.dot_dimension_numbers<[1], [0], [0], [1], [0, 0, 1, 1], [], []>} : vector<8x32xf32>, vector<32x32xf32>, vector<8x32xf32> -> vector<8x32xf32>
    %c0_9 = arith.constant 0 : index
    %c0_10 = arith.constant 0 : index
    %39 = vector.load %arg5[%c0_9, %c0_10] : memref<1x32xf32, #tpu.memory_space<vmem>>, vector<1x32xf32>
    %40 = vector.broadcast %39 : vector<1x32xf32> to vector<8x32xf32>
    %41 = arith.addf %38, %40 : vector<8x32xf32>
    %c0_11 = arith.constant 0 : index
    %c0_12 = arith.constant 0 : index
    %42 = vector.load %arg6[%c0_11, %c0_12] : memref<8x32xf32, #tpu.memory_space<vmem>>, vector<8x32xf32>
    tpu.vector_store %arg6[%c0_11, %c0_12], %41 {strides = array<i32>} : memref<8x32xf32, #tpu.memory_space<vmem>>, vector<8x32xf32>,
    return
  }
  func.func @transform_0(%arg0: i32) -> (i32, i32) {
    %c0_i32 = arith.constant 0 : i32
    %c0_i32_0 = arith.constant 0 : i32
    return %arg0, %c0_i32 : i32, i32
  }
  func.func @transform_1(%arg0: i32) -> (i32, i32) {
    %c0_i32 = arith.constant 0 : i32
    %c0_i32_0 = arith.constant 0 : i32
    %c0_i32_1 = arith.constant 0 : i32
    return %c0_i32, %c0_i32_0 : i32, i32
  }
  func.func @transform_2(%arg0: i32) -> (i32, i32) {
    %c0_i32 = arith.constant 0 : i32
    %c0_i32_0 = arith.constant 0 : i32
    %c0_i32_1 = arith.constant 0 : i32
    return %c0_i32, %c0_i32_0 : i32, i32
  }
  func.func @transform_3(%arg0: i32) -> (i32, i32) {
    %c0_i32 = arith.constant 0 : i32
    %c0_i32_0 = arith.constant 0 : i32
    %c0_i32_1 = arith.constant 0 : i32
    return %c0_i32, %c0_i32_0 : i32, i32
  }
  func.func @transform_4(%arg0: i32) -> (i32, i32) {
    %c0_i32 = arith.constant 0 : i32
    %c0_i32_0 = arith.constant 0 : i32
    %c0_i32_1 = arith.constant 0 : i32
    return %c0_i32, %c0_i32_0 : i32, i32
  }
  func.func @transform_5(%arg0: i32) -> (i32, i32) {
    %c0_i32 = arith.constant 0 : i32
    %c0_i32_0 = arith.constant 0 : i32
    return %arg0, %c0_i32 : i32, i32
  }
}

</mosaic_0001>

<llo_original>
// kernel: image_embedding_forward.1
$region0: #{image_embedding_forward.1}
  #allocation0 [shape = 'u32[]', space=smem, size = 0x4, offset = 0x4, fixed_abs, tag = 'smem constant byte address 0x4 - core index']
  #allocation1 [shape = 'u32[72,128]{1,0:T(1,128)}', space=vmem, size = 0x9000, scoped, tag = 'internal scratch']
  %s0 = inlined_call_operand.vmem [shape: f32[8,256], index: 0, kind: input, shape index: {}]
  %s1 = inlined_call_operand.vmem [shape: f32[256,128], index: 1, kind: input, shape index: {}]
  %s2 = inlined_call_operand.vmem [shape: f32[1,128], index: 2, kind: input, shape index: {}]
  %s3 = inlined_call_operand.vmem [shape: f32[32,32], index: 3, kind: input, shape index: {}]
  %s4 = inlined_call_operand.vmem [shape: f32[1,32], index: 4, kind: input, shape index: {}]
  %s5 = inlined_call_operand.vmem [shape: f32[8,32], index: 5, kind: output, shape index: {}]
  %s6 = sld [smem:[#allocation0]]
  $region30: #{image_embedding_forward.1} parent=0
    _
  %s8 = ssub.s32 1, %s6
  %s9 = scalar_select 0, %s8, %s6
  // Predicated region
  $region2: #{image_embedding_forward.1} parent=0 // pred_check
    _
  $region3: #{image_embedding_forward.1} parent=0 // pred_check_branch
    %11 = sbr.rel (0) target = $region5
  $region4: #{image_embedding_forward.1} parent=0 // pred_region
    _
  $region5: #{image_embedding_forward.1} parent=0 // pred_fallthru
    _
  // Predicated region
  $region6: #{image_embedding_forward.1} parent=0 // pred_check
    _
  $region7: #{image_embedding_forward.1} parent=0 // pred_check_branch
    %13 = sbr.rel (0) target = $region9
  $region8: #{image_embedding_forward.1} parent=0 // pred_region
    _
  $region9: #{image_embedding_forward.1} parent=0 // pred_fallthru
    _
  // Predicated region
  $region10: #{image_embedding_forward.1} parent=0 // pred_check
    _
  $region11: #{image_embedding_forward.1} parent=0 // pred_check_branch
    %15 = sbr.rel (0) target = $region13
  $region12: #{image_embedding_forward.1} parent=0 // pred_region
    _
  $region13: #{image_embedding_forward.1} parent=0 // pred_fallthru
    _
  // Predicated region
  $region14: #{image_embedding_forward.1} parent=0 // pred_check
    _
  $region15: #{image_embedding_forward.1} parent=0 // pred_check_branch
    %17 = sbr.rel (0) target = $region17
  $region16: #{image_embedding_forward.1} parent=0 // pred_region
    _
  $region17: #{image_embedding_forward.1} parent=0 // pred_fallthru
    _
  // Predicated region
  $region18: #{image_embedding_forward.1} parent=0 // pred_check
    _
  $region19: #{image_embedding_forward.1} parent=0 // pred_check_branch
    %19 = sbr.rel (0) target = $region21
  $region20: #{image_embedding_forward.1} parent=0 // pred_region
    _
  $region21: #{image_embedding_forward.1} parent=0 // pred_fallthru
    _
  %v20 = vld [vmem:[%s0] sm:$0xff]
  %v21 = vld [vmem:[%s0 + $0x8] sm:$0xff]
  %v22 = vld [vmem:[%s1] sm:$0xff]
  %v23 = vld [vmem:[%s1 + $0x8] sm:$0xff]
  %v24 = vld [vmem:[%s1 + $0x10] sm:$0xff]
  %v25 = vld [vmem:[%s1 + $0x18] sm:$0xff]
  %v26 = vld [vmem:[%s1 + $0x20] sm:$0xff]
  %v27 = vld [vmem:[%s1 + $0x28] sm:$0xff]
  %v28 = vld [vmem:[%s1 + $0x30] sm:$0xff]
  %v29 = vld [vmem:[%s1 + $0x38] sm:$0xff]
  %v30 = vld [vmem:[%s1 + $0x40] sm:$0xff]
  %v31 = vld [vmem:[%s1 + $0x48] sm:$0xff]
  %v32 = vld [vmem:[%s1 + $0x50] sm:$0xff]
  %v33 = vld [vmem:[%s1 + $0x58] sm:$0xff]
  %v34 = vld [vmem:[%s1 + $0x60] sm:$0xff]
  %v35 = vld [vmem:[%s1 + $0x68] sm:$0xff]
  %v36 = vld [vmem:[%s1 + $0x70] sm:$0xff]
  %v37 = vld [vmem:[%s1 + $0x78] sm:$0xff]
  %v38 = vld [vmem:[%s1 + $0x80] sm:$0xff]
  %v39 = vld [vmem:[%s1 + $0x88] sm:$0xff]
  %v40 = vld [vmem:[%s1 + $0x90] sm:$0xff]
  %v41 = vld [vmem:[%s1 + $0x98] sm:$0xff]
  %v42 = vld [vmem:[%s1 + $0xa0] sm:$0xff]
  %v43 = vld [vmem:[%s1 + $0xa8] sm:$0xff]
  %v44 = vld [vmem:[%s1 + $0xb0] sm:$0xff]
  %v45 = vld [vmem:[%s1 + $0xb8] sm:$0xff]
  %v46 = vld [vmem:[%s1 + $0xc0] sm:$0xff]
  %v47 = vld [vmem:[%s1 + $0xc8] sm:$0xff]
  %v48 = vld [vmem:[%s1 + $0xd0] sm:$0xff]
  %v49 = vld [vmem:[%s1 + $0xd8] sm:$0xff]
  %v50 = vld [vmem:[%s1 + $0xe0] sm:$0xff]
  %v51 = vld [vmem:[%s1 + $0xe8] sm:$0xff]
  %v52 = vld [vmem:[%s1 + $0xf0] sm:$0xff]
  %v53 = vld [vmem:[%s1 + $0xf8] sm:$0xff]
  %v54 = vld [vmem:[%s2] sm:$0x1]
  %v56 = vperm.slane %v54, 0
  %58 = vmatpush.msra.mxu0 %v37
  %59 = vmatpush.msra.mxu0 %v36
  %60 = vmatpush.msra.mxu0 %v35
  %61 = vmatpush.msra.mxu0 %v34
  %62 = vmatpush.msra.mxu0 %v33
  %63 = vmatpush.msra.mxu0 %v32
  %64 = vmatpush.msra.mxu0 %v31
  %65 = vmatpush.msra.mxu0 %v30
  %66 = vmatpush.msra.mxu0 %v29
  %67 = vmatpush.msra.mxu0 %v28
  %68 = vmatpush.msra.mxu0 %v27
  %69 = vmatpush.msra.mxu0 %v26
  %70 = vmatpush.msra.mxu0 %v25
  %71 = vmatpush.msra.mxu0 %v24
  %72 = vmatpush.msra.mxu0 %v23
  %73 = vmatpush.msra.mxu0 %v22
  %74 = vmatmul.f32.gmra.mxu0 %v20
  %v75 = vpop.f32.mrf.mxu0
  %v76 = vadd.f32 %v56, %v75
  %77 = vdwg.mxu0
  %78 = vmatpush.msra.mxu0 %v53
  %79 = vmatpush.msra.mxu0 %v52
  %80 = vmatpush.msra.mxu0 %v51
  %81 = vmatpush.msra.mxu0 %v50
  %82 = vmatpush.msra.mxu0 %v49
  %83 = vmatpush.msra.mxu0 %v48
  %84 = vmatpush.msra.mxu0 %v47
  %85 = vmatpush.msra.mxu0 %v46
  %86 = vmatpush.msra.mxu0 %v45
  %87 = vmatpush.msra.mxu0 %v44
  %88 = vmatpush.msra.mxu0 %v43
  %89 = vmatpush.msra.mxu0 %v42
  %90 = vmatpush.msra.mxu0 %v41
  %91 = vmatpush.msra.mxu0 %v40
  %92 = vmatpush.msra.mxu0 %v39
  %93 = vmatpush.msra.mxu0 %v38
  %94 = vmatmul.f32.gmra.mxu0 %v21
  %v95 = vpop.f32.mrf.mxu0
  %v96 = vadd.f32 %v76, %v95
  %97 = vdwg.mxu0
  %v98 = vmax.f32 %v96, 0.0
  %100 = vrot.lane.b32.xlu0 %v98, 120
  %v101 = vpop.permute.xlu0 %100
  %v103 = vmax.f32 %v98, %v101
  %104 = vrot.lane.b32.xlu0 %v98, 96
  %v105 = vpop.permute.xlu0 %104
  %v107 = vmax.f32 %v103, %v105
  %108 = vrot.lane.b32.xlu0 %v98, 88
  %v109 = vpop.permute.xlu0 %108
  %v111 = vmax.f32 %v107, %v109
  %113 = vrot.lane.b32.xlu0 %v111, 120
  %v114 = vpop.permute.xlu0 %113
  %116 = vrot.lane.b32.xlu0 %v111, 80
  %v117 = vpop.permute.xlu0 %116
  %119 = vrot.lane.b32.xlu0 %v111, 72
  %v120 = vpop.permute.xlu0 %119
  %vm122 = vcmask 64512
  %v123 = vsel %vm122, %v111, %v114
  %vm124 = vcmask 130048
  %v125 = vsel %vm124, %v123, %v117
  %vm126 = vcmask 195584
  %v127 = vsel %vm126, %v125, %v120
  %v128 = vld [vmem:[%s3] sm:$0xff]
  %v129 = vld [vmem:[%s3 + $0x8] sm:$0xff]
  %v130 = vld [vmem:[%s3 + $0x10] sm:$0xff]
  %v131 = vld [vmem:[%s3 + $0x18] sm:$0xff]
  %v132 = vld [vmem:[%s4] sm:$0x1]
  %v134 = vperm.slane %v132, 0
  %vm136 = vcmask 261120
  %v138 = vsel %vm136, %v127, 0
  %140 = vmatpush.msra.mxu0 0.0
  %141 = vmatpush.msra.mxu0 0.0
  %142 = vmatpush.msra.mxu0 0.0
  %143 = vmatpush.msra.mxu0 0.0
  %144 = vmatpush.msra.mxu0 0.0
  %145 = vmatpush.msra.mxu0 0.0
  %146 = vmatpush.msra.mxu0 0.0
  %147 = vmatpush.msra.mxu0 0.0
  %148 = vmatpush.msra.mxu0 0.0
  %149 = vmatpush.msra.mxu0 0.0
  %150 = vmatpush.msra.mxu0 0.0
  %151 = vmatpush.msra.mxu0 0.0
  %152 = vmatpush.msra.mxu0 %v131
  %153 = vmatpush.msra.mxu0 %v130
  %154 = vmatpush.msra.mxu0 %v129
  %155 = vmatpush.msra.mxu0 %v128
  %156 = vmatmul.f32.gmra.mxu0 %v138
  %v157 = vpop.f32.mrf.mxu0
  %v158 = vadd.f32 %v134, %v157
  %159 = vdwg.mxu0
  %160 = vst.msk [vmem:[%s5] sm:$0xff] %vm136, %v158
  // Predicated region
  $region22: #{image_embedding_forward.1} parent=0 // pred_check
    _
  $region23: #{image_embedding_forward.1} parent=0 // pred_check_branch
    %162 = sbr.rel (0) target = $region25
  $region24: #{image_embedding_forward.1} parent=0 // pred_region
    _
  $region25: #{image_embedding_forward.1} parent=0 // pred_fallthru
    _
  // Predicated region
  $region26: #{image_embedding_forward.1} parent=0 // pred_check
    _
  $region27: #{image_embedding_forward.1} parent=0 // pred_check_branch
    %164 = sbr.rel (0) target = $region29
  $region28: #{image_embedding_forward.1} parent=0 // pred_region
    _
  $region29: #{image_embedding_forward.1} parent=0 // pred_fallthru
    _

</llo_original>
